<compile_context>
chip_gen: v7x
topology: tpu7x:2x2x1
jax: 0.10.0
libtpu: 0.0.40
codegen_flags: <defaults>
</compile_context>

<pallas_src>
import functools

import jax
import jax.numpy as jnp
from jax.experimental import pallas as pl
from jax.experimental.pallas import tpu as pltpu


def _round_up(x, m):
    return (x + m - 1) // m * m


def _block_kernel(x_ref, w_ref, b_ref, o_ref, *, kernel_s, l_out, hpad):
    # x_ref: (TB, max_len_pad, emb)       one batch tile
    # w_ref: (emb, kernel_s*hpad)          tap weights concatenated along N
    # b_ref: (1, hpad)
    # o_ref: (TB, hpad)
    tb, max_len_pad, emb = x_ref.shape

    # Free view: max_len_pad is sublane-aligned (multiple of 8).
    xf = x_ref[...].reshape(tb * max_len_pad, emb)

    # One wide-N matmul covering all taps; f32 accumulation on the MXU.
    y = jnp.dot(xf, w_ref[...], preferred_element_type=jnp.float32)
    y = y.reshape(tb, max_len_pad, kernel_s * hpad)

    # Streaming shift-add over lane-aligned (multiple-of-128) tap slices.
    acc = y[:, :l_out, 0:hpad]
    for k in range(1, kernel_s):                       # small static trip count
        acc = acc + y[:, k:k + l_out, k * hpad:(k + 1) * hpad]

    # Max-pool first, then bias + ReLU on the (TB, Hpad) result only.
    m = jnp.max(acc, axis=1)                           # (TB, Hpad)
    o_ref[...] = jnp.maximum(m + b_ref[...], 0.0).astype(o_ref.dtype)


def _vmem_bytes_per_step(tb, max_len_pad, emb, hpad, kernel_s, l_out, in_itemsize):
    """Rough per-step VMEM footprint (lane-padded storage, double-buffered I/O)."""
    emb_pad = _round_up(emb, 128)
    x_tile = 2 * tb * max_len_pad * emb_pad * in_itemsize
    w_tile = 2 * _round_up(emb, 8) * kernel_s * hpad * in_itemsize
    y_buf = tb * max_len_pad * kernel_s * hpad * 4            # f32 matmul result
    acc = tb * _round_up(l_out, 8) * hpad * 4
    out = 2 * tb * hpad * 4
    return x_tile + w_tile + y_buf + acc + out


def text_cnn_block(x, weight, bias, *, kernel_s, tb_max=128,
                   vmem_budget_bytes=24 << 20, use_bf16=False):
    """x: (B, 1, max_len, emb); weight: (H, 1, kernel_s, emb); bias: (H,) -> (B, H)."""
    b, _, max_len, emb = x.shape
    h = weight.shape[0]
    l_out = max_len - kernel_s + 1
    if l_out < 1:
        raise ValueError(f"kernel_s={kernel_s} must be <= max_len={max_len}")

    # Lane-dense output: pad H up to a multiple of 128 (sliced back below).
    hpad = _round_up(h, 128)
    # Sublane-aligned length so the in-kernel flatten is a free view.
    max_len_pad = _round_up(max_len, 8)

    in_itemsize = 2 if use_bf16 else 4

    # --- batch tile selection: VMEM budget first, then pipeline-depth heuristic ---
    tb = min(_round_up(b, 8), _round_up(tb_max, 8))
    while tb > 8 and _vmem_bytes_per_step(
            tb, max_len_pad, emb, hpad, kernel_s, l_out, in_itemsize) > vmem_budget_bytes:
        tb -= 8
    # For large batches keep ~8 grid steps total (>=3-4 per TC after megacore
    # split) so the next x tile's DMA stays hidden behind compute.
    target_steps = 8
    if b >= 8 * target_steps:
        tb = min(tb, _round_up((b + target_steps - 1) // target_steps, 8))
    tb = max(tb, 8)
    b_pad = _round_up(b, tb)

    # --- layout plumbing, entirely outside the kernel ---
    x_sq = x[:, 0, :, :]                                        # (B, max_len, emb)
    if b_pad != b or max_len_pad != max_len:
        x_sq = jnp.pad(x_sq, ((0, b_pad - b), (0, max_len_pad - max_len), (0, 0)))

    w_k = jnp.transpose(weight[:, 0, :, :], (1, 2, 0))          # (kernel_s, emb, H)
    if hpad != h:
        w_k = jnp.pad(w_k, ((0, 0), (0, 0), (0, hpad - h)))
        bias_p = jnp.pad(bias, (0, hpad - h))
    else:
        bias_p = bias
    # Concatenate taps along N: (emb, kernel_s*hpad); tap k occupies lanes
    # [k*hpad, (k+1)*hpad).
    w_cat = jnp.transpose(w_k, (1, 0, 2)).reshape(emb, kernel_s * hpad)
    b_2d = bias_p.reshape(1, hpad).astype(jnp.float32)

    if use_bf16:
        x_sq = x_sq.astype(jnp.bfloat16)
        w_cat = w_cat.astype(jnp.bfloat16)

    est = _vmem_bytes_per_step(tb, max_len_pad, emb, hpad, kernel_s, l_out, in_itemsize)
    vmem_limit = min(max(est + est // 4 + (1 << 20), 16 << 20), 48 << 20)

    kernel = functools.partial(_block_kernel, kernel_s=kernel_s, l_out=l_out, hpad=hpad)

    out = pl.pallas_call(
        kernel,
        out_shape=jax.ShapeDtypeStruct((b_pad, hpad), x.dtype),
        grid_spec=pltpu.PrefetchScalarGridSpec(
            num_scalar_prefetch=0,
            grid=(b_pad // tb,),
            in_specs=[
                pl.BlockSpec((tb, max_len_pad, emb), lambda i: (i, 0, 0)),
                pl.BlockSpec((emb, kernel_s * hpad), lambda i: (0, 0)),
                pl.BlockSpec((1, hpad), lambda i: (0, 0)),
            ],
            out_specs=pl.BlockSpec((tb, hpad), lambda i: (i, 0)),
        ),
        compiler_params=pltpu.CompilerParams(
            dimension_semantics=("parallel",),
            vmem_limit_bytes=vmem_limit),
    )(x_sq, w_cat, b_2d)

    return out[:b, :h]                                          # drop batch/H padding


def _reference(x, weight, bias, *, kernel_s):
    """Pure-JAX reference mirroring the PyTorch forward."""
    b, _, max_len, emb = x.shape
    h = weight.shape[0]
    l_out = max_len - kernel_s + 1
    x_sq = x[:, 0]                                   # (B, max_len, emb)
    w_flat = weight[:, 0].reshape(h, -1)             # (H, kernel_s*emb)
    patches = jnp.stack(
        [x_sq[:, t:t + kernel_s, :].reshape(b, -1) for t in range(l_out)], axis=1
    )                                                # (B, L_out, kernel_s*emb)
    conv = jnp.einsum("ble,he->blh", patches, w_flat) + bias  # (B, L_out, H)
    return jnp.max(jnp.maximum(conv, 0.0), axis=1)   # (B, H)


if __name__ == "__main__":
    # Small shapes consistent with the module: batch=2, max_len=16, emb=32,
    # hidden_num=32, kernel_s=3.
    B, max_len, emb, hidden_num, kernel_s = 2, 16, 32, 32, 3

    key = jax.random.PRNGKey(0)
    kx, kw, kb = jax.random.split(key, 3)
    x = jax.random.normal(kx, (B, 1, max_len, emb), dtype=jnp.float32)
    weight = jax.random.normal(kw, (hidden_num, 1, kernel_s, emb),
                               dtype=jnp.float32) * 0.1
    bias = jax.random.normal(kb, (hidden_num,), dtype=jnp.float32) * 0.1

    out = jax.block_until_ready(text_cnn_block(x, weight, bias, kernel_s=kernel_s))
    ref = _reference(x, weight, bias, kernel_s=kernel_s)

    assert out.shape == (B, hidden_num), out.shape
    assert jnp.allclose(out, ref, atol=1e-4, rtol=1e-4), "mismatch vs reference"
    print("KERNEL_OK")
</pallas_src>

<mosaic_0001>
module attributes {stable_mosaic.version = 11 : i64} {
  func.func @_block_kernel(%arg0: i32, %arg1: memref<8x16x32xf32, #tpu.memory_space<vmem>>, %arg2: memref<32x384xf32, #tpu.memory_space<vmem>>, %arg3: memref<1x128xf32, #tpu.memory_space<vmem>>, %arg4: memref<8x128xf32, #tpu.memory_space<vmem>>) attributes {dimension_semantics = [#tpu.dimension_semantics<parallel>], iteration_bounds = array<i64: 1>, scalar_prefetch = 0 : i64, scratch_operands = 0 : i64, tpu.core_type = #tpu.core_type<tc>, window_params = [{transform_indices = @transform_0, window_bounds = array<i64: 8, 16, 32>}, {pipeline_mode = #tpu.pipeline_mode<synchronous>, transform_indices = @transform_1, window_bounds = array<i64: 32, 384>}, {pipeline_mode = #tpu.pipeline_mode<synchronous>, transform_indices = @transform_2, window_bounds = array<i64: 1, 128>}, {transform_indices = @transform_3, window_bounds = array<i64: 8, 128>}]} {
    %c0 = arith.constant 0 : index
    %c0_0 = arith.constant 0 : index
    %c0_1 = arith.constant 0 : index
    %0 = vector.load %arg1[%c0, %c0_0, %c0_1] : memref<8x16x32xf32, #tpu.memory_space<vmem>>, vector<8x16x32xf32>
    %1 = vector.shape_cast %0 : vector<8x16x32xf32> to vector<128x32xf32>
    %c0_2 = arith.constant 0 : index
    %c0_3 = arith.constant 0 : index
    %2 = vector.load %arg2[%c0_2, %c0_3] : memref<32x384xf32, #tpu.memory_space<vmem>>, vector<32x384xf32>
    %cst = arith.constant dense<0.000000e+00> : vector<128x384xf32>
    %3 = tpu.matmul %1, %2, %cst {dimension_numbers = #tpu.dot_dimension_numbers<[1], [0], [0], [1], [0, 0, 1, 1], [], []>} : vector<128x32xf32>, vector<32x384xf32>, vector<128x384xf32> -> vector<128x384xf32>
    %4 = vector.shape_cast %3 : vector<128x384xf32> to vector<8x16x384xf32>
    %5 = vector.extract_strided_slice %4 {offsets = [0, 0, 0], sizes = [8, 14, 128], strides = [1, 1, 1]} : vector<8x16x384xf32> to vector<8x14x128xf32>
    %6 = vector.extract_strided_slice %4 {offsets = [0, 1, 128], sizes = [8, 14, 128], strides = [1, 1, 1]} : vector<8x16x384xf32> to vector<8x14x128xf32>
    %7 = arith.addf %5, %6 : vector<8x14x128xf32>
    %8 = vector.extract_strided_slice %4 {offsets = [0, 2, 256], sizes = [8, 14, 128], strides = [1, 1, 1]} : vector<8x16x384xf32> to vector<8x14x128xf32>
    %9 = arith.addf %7, %8 : vector<8x14x128xf32>
    %cst_4 = arith.constant dense<0xFF800000> : vector<8x128xf32>
    %10 = vector.multi_reduction <maximumf>, %9, %cst_4 [1] : vector<8x14x128xf32> to vector<8x128xf32>
    %c0_5 = arith.constant 0 : index
    %c0_6 = arith.constant 0 : index
    %11 = vector.load %arg3[%c0_5, %c0_6] : memref<1x128xf32, #tpu.memory_space<vmem>>, vector<1x128xf32>
    %12 = vector.broadcast %11 : vector<1x128xf32> to vector<8x128xf32>
    %13 = arith.addf %10, %12 : vector<8x128xf32>
    %cst_7 = arith.constant 0.000000e+00 : f32
    %14 = vector.broadcast %cst_7 : f32 to vector<8x128xf32>
    %15 = arith.maximumf %13, %14 : vector<8x128xf32>
    %c0_8 = arith.constant 0 : index
    %c0_9 = arith.constant 0 : index
    %16 = vector.load %arg4[%c0_8, %c0_9] : memref<8x128xf32, #tpu.memory_space<vmem>>, vector<8x128xf32>
    tpu.vector_store %arg4[%c0_8, %c0_9], %15 {strides = array<i32>} : memref<8x128xf32, #tpu.memory_space<vmem>>, vector<8x128xf32>,
    return
  }
  func.func @transform_0(%arg0: i32) -> (i32, i32, i32) {
    %c0_i32 = arith.constant 0 : i32
    %c0_i32_0 = arith.constant 0 : i32
    %c0_i32_1 = arith.constant 0 : i32
    return %arg0, %c0_i32, %c0_i32_0 : i32, i32, i32
  }
  func.func @transform_1(%arg0: i32) -> (i32, i32) {
    %c0_i32 = arith.constant 0 : i32
    %c0_i32_0 = arith.constant 0 : i32
    %c0_i32_1 = arith.constant 0 : i32
    return %c0_i32, %c0_i32_0 : i32, i32
  }
  func.func @transform_2(%arg0: i32) -> (i32, i32) {
    %c0_i32 = arith.constant 0 : i32
    %c0_i32_0 = arith.constant 0 : i32
    %c0_i32_1 = arith.constant 0 : i32
    return %c0_i32, %c0_i32_0 : i32, i32
  }
  func.func @transform_3(%arg0: i32) -> (i32, i32) {
    %c0_i32 = arith.constant 0 : i32
    %c0_i32_0 = arith.constant 0 : i32
    return %arg0, %c0_i32 : i32, i32
  }
}

</mosaic_0001>

<llo_original>
// kernel: tpu_custom_call.1
$region0: #{tpu_custom_call.1}
  #allocation0 [shape = 'u32[]', space=smem, size = 0x4, offset = 0x4, fixed_abs, tag = 'smem constant byte address 0x4 - core index']
  #allocation1 [shape = 'u32[144,128]{1,0:T(1,128)}', space=vmem, size = 0x12000, scoped, tag = 'internal scratch']
  %s0 = inlined_call_operand.hbm [shape: f32[8,16,32], index: 0, kind: input, shape index: {}]
  %s1 = inlined_call_operand.hbm [shape: f32[32,384], index: 1, kind: input, shape index: {}]
  %s2 = inlined_call_operand.vmem [shape: f32[1,128], index: 2, kind: input, shape index: {}]
  %s3 = inlined_call_operand.hbm [shape: f32[8,128], index: 3, kind: output, shape index: {}]
  %s4 = sld [smem:[#allocation0]]
  $region30: #{tpu_custom_call.1} parent=0
    _
  %s6 = ssub.s32 1, %s4
  %s7 = scalar_select 0, %s6, %s4
  $region1: #{tpu_custom_call.1} parent=0
    #allocation2 [shape = 'u8[65536]{0}', space=vmem, size = 0x10000, scoped, tag = 'input window, operand 0, single buffered']
    #allocation3 [shape = 's32[1]{0}', space=sflag, size = 0x4, scoped, tag = 'scoped memory for tpu_custom_call.1']
    #allocation4 [shape = 's32[1]{0}', space=sflag, size = 0x4, scoped, tag = 'scoped memory for tpu_custom_call.1']
    #allocation5 [shape = 'u8[49152]{0}', space=vmem, size = 0xc000, scoped, tag = 'input window, operand 1, single buffered']
    #allocation6 [shape = 's32[1]{0}', space=sflag, size = 0x4, scoped, tag = 'scoped memory for tpu_custom_call.1']
    #allocation7 [shape = 'u8[4096]{0}', space=vmem, size = 0x1000, scoped, tag = 'output window, operand 0, single buffered']
    %8 = vsyncpa [#allocation3], 0
    %9 = vsyncpa [#allocation6], 0
    %10 = vsyncpa [#allocation4], 0
    // Predicated region
    $region2: #{tpu_custom_call.1} parent=1 // pred_check
      _
    $region3: #{tpu_custom_call.1} parent=1 // pred_check_branch
      %12 = sbr.rel (0) target = $region5
    $region4: #{tpu_custom_call.1} parent=1 // pred_region
      %s14 = ssub.s32 2048, 2048
      %15 = vsyncadd [#allocation3], %s14
      %s16 = sshll.u32 [#allocation2], 4
      %s17 = int_to_ptr.vmem [resolvable:$true] %s16
      %22 = dma.hbm_to_vmem [thread:$0]  %s0, 2048, %s17, [#allocation3], 128, 128, 8
    $region5: #{tpu_custom_call.1} parent=1 // pred_fallthru
      _
    // Predicated region
    $region6: #{tpu_custom_call.1} parent=1 // pred_check
      _
    $region7: #{tpu_custom_call.1} parent=1 // pred_check_branch
      %24 = sbr.rel (0) target = $region9
    $region8: #{tpu_custom_call.1} parent=1 // pred_region
      %s26 = ssub.s32 1536, 1536
      %27 = vsyncadd [#allocation6], %s26
      %s28 = sshll.u32 [#allocation5], 4
      %s29 = int_to_ptr.vmem [resolvable:$true] %s28
      %34 = dma.hbm_to_vmem [thread:$0]  %s1, 1536, %s29, [#allocation6], 384, 384, 24
    $region9: #{tpu_custom_call.1} parent=1 // pred_fallthru
      _
    // Predicated region
    $region10: #{tpu_custom_call.1} parent=1 // pred_check
      _
    $region11: #{tpu_custom_call.1} parent=1 // pred_check_branch
      %36 = sbr.rel (0) target = $region13
    $region12: #{tpu_custom_call.1} parent=1 // pred_region
      _
    $region13: #{tpu_custom_call.1} parent=1 // pred_fallthru
      _
    // Predicated region
    $region14: #{tpu_custom_call.1} parent=1 // pred_check
      _
    $region15: #{tpu_custom_call.1} parent=1 // pred_check_branch
      %38 = sbr.rel (0) target = $region17
    $region16: #{tpu_custom_call.1} parent=1 // pred_region
      %39 = dma.done [#allocation3], 2048
    $region17: #{tpu_custom_call.1} parent=1 // pred_fallthru
      _
    // Predicated region
    $region18: #{tpu_custom_call.1} parent=1 // pred_check
      _
    $region19: #{tpu_custom_call.1} parent=1 // pred_check_branch
      %41 = sbr.rel (0) target = $region21
    $region20: #{tpu_custom_call.1} parent=1 // pred_region
      %42 = dma.done [#allocation6], 1536
    $region21: #{tpu_custom_call.1} parent=1 // pred_fallthru
      _
    %v43 = vld [vmem:[#allocation2] sm:$0xff]
    %v44 = vld [vmem:[#allocation2 + $0x8] sm:$0xff]
    %v45 = vld [vmem:[#allocation2 + $0x10] sm:$0xff]
    %v46 = vld [vmem:[#allocation2 + $0x18] sm:$0xff]
    %v47 = vld [vmem:[#allocation2 + $0x20] sm:$0xff]
    %v48 = vld [vmem:[#allocation2 + $0x28] sm:$0xff]
    %v49 = vld [vmem:[#allocation2 + $0x30] sm:$0xff]
    %v50 = vld [vmem:[#allocation2 + $0x38] sm:$0xff]
    %v51 = vld [vmem:[#allocation2 + $0x40] sm:$0xff]
    %v52 = vld [vmem:[#allocation2 + $0x48] sm:$0xff]
    %v53 = vld [vmem:[#allocation2 + $0x50] sm:$0xff]
    %v54 = vld [vmem:[#allocation2 + $0x58] sm:$0xff]
    %v55 = vld [vmem:[#allocation2 + $0x60] sm:$0xff]
    %v56 = vld [vmem:[#allocation2 + $0x68] sm:$0xff]
    %v57 = vld [vmem:[#allocation2 + $0x70] sm:$0xff]
    %v58 = vld [vmem:[#allocation2 + $0x78] sm:$0xff]
    %v59 = vld [vmem:[#allocation5] sm:$0xff]
    %v60 = vld [vmem:[#allocation5 + $0x8] sm:$0xff]
    %v61 = vld [vmem:[#allocation5 + $0x10] sm:$0xff]
    %v62 = vld [vmem:[#allocation5 + $0x18] sm:$0xff]
    %v63 = vld [vmem:[#allocation5 + $0x20] sm:$0xff]
    %v64 = vld [vmem:[#allocation5 + $0x28] sm:$0xff]
    %v65 = vld [vmem:[#allocation5 + $0x30] sm:$0xff]
    %v66 = vld [vmem:[#allocation5 + $0x38] sm:$0xff]
    %v67 = vld [vmem:[#allocation5 + $0x40] sm:$0xff]
    %v68 = vld [vmem:[#allocation5 + $0x48] sm:$0xff]
    %v69 = vld [vmem:[#allocation5 + $0x50] sm:$0xff]
    %v70 = vld [vmem:[#allocation5 + $0x58] sm:$0xff]
    %vm71 = vcmask 261120
    %v73 = vsel %vm71, %v43, 0
    %v76 = vsel %vm71, %v44, 0
    %v79 = vsel %vm71, %v45, 0
    %v82 = vsel %vm71, %v46, 0
    %v85 = vsel %vm71, %v47, 0
    %v88 = vsel %vm71, %v48, 0
    %v91 = vsel %vm71, %v49, 0
    %v94 = vsel %vm71, %v50, 0
    %v97 = vsel %vm71, %v51, 0
    %v100 = vsel %vm71, %v52, 0
    %v103 = vsel %vm71, %v53, 0
    %v106 = vsel %vm71, %v54, 0
    %v109 = vsel %vm71, %v55, 0
    %v112 = vsel %vm71, %v56, 0
    %v115 = vsel %vm71, %v57, 0
    %v118 = vsel %vm71, %v58, 0
    %120 = vmatprep.subr.mxu0 %v60
    %121 = vmatpush1.msra.mxu0 %v59
    %122 = vmatprep.subr.mxu0 %v63
    %123 = vmatpush1.msra.mxu0 %v62
    %124 = vmatprep.subr.mxu0 %v66
    %125 = vmatpush1.msra.mxu0 %v65
    %126 = vmatprep.subr.mxu0 %v69
    %127 = vmatpush1.msra.mxu0 %v68
    %128 = vmatprep.subr.mxu0 0.0
    %129 = vmatpush1.msra.mxu0 0.0
    %130 = vmatprep.subr.mxu0 0.0
    %131 = vmatpush1.msra.mxu0 0.0
    %132 = vmatprep.subr.mxu0 0.0
    %133 = vmatpush1.msra.mxu0 0.0
    %134 = vmatprep.subr.mxu0 0.0
    %135 = vmatpush1.msra.mxu0 0.0
    %136 = vmatprep.subr.mxu0 0.0
    %137 = vmatpush1.msra.mxu0 0.0
    %138 = vmatprep.subr.mxu0 0.0
    %139 = vmatpush1.msra.mxu0 0.0
    %140 = vmatprep.subr.mxu0 0.0
    %141 = vmatpush1.msra.mxu0 0.0
    %142 = vmatprep.subr.mxu0 0.0
    %143 = vmatpush1.msra.mxu0 0.0
    %144 = vmatprep.subr.mxu0 0.0
    %145 = vmatpush1.msra.mxu0 0.0
    %146 = vmatprep.subr.mxu0 0.0
    %147 = vmatpush1.msra.mxu0 0.0
    %148 = vmatprep.subr.mxu0 0.0
    %149 = vmatpush1.msra.mxu0 0.0
    %150 = vmatprep.subr.mxu0 0.0
    %151 = vmatpush1.msra.mxu0 0.0
    %152 = vmatprep.subr.mxu0 0.0
    %153 = vmatpush1.msra.mxu0 0.0
    %154 = vmatprep.subr.mxu0 0.0
    %155 = vmatpush1.msra.mxu0 0.0
    %156 = vmatprep.subr.mxu0 0.0
    %157 = vmatpush1.msra.mxu0 0.0
    %158 = vmatprep.subr.mxu0 0.0
    %159 = vmatpush1.msra.mxu0 0.0
    %160 = vmatprep.subr.mxu0 0.0
    %161 = vmatpush1.msra.mxu0 0.0
    %162 = vmatprep.subr.mxu0 0.0
    %163 = vmatpush1.msra.mxu0 0.0
    %164 = vmatprep.subr.mxu0 0.0
    %165 = vmatpush1.msra.mxu0 0.0
    %166 = vmatprep.subr.mxu0 0.0
    %167 = vmatpush1.msra.mxu0 0.0
    %168 = vmatprep.subr.mxu0 0.0
    %169 = vmatpush1.msra.mxu0 0.0
    %170 = vmatprep.subr.mxu0 0.0
    %171 = vmatpush1.msra.mxu0 0.0
    %172 = vmatprep.subr.mxu0 0.0
    %173 = vmatpush1.msra.mxu0 0.0
    %174 = vmatprep.subr.mxu0 0.0
    %175 = vmatpush1.msra.mxu0 0.0
    %176 = vmatprep.subr.mxu0 0.0
    %177 = vmatpush1.msra.mxu0 0.0
    %178 = vmatprep.subr.mxu0 0.0
    %179 = vmatpush1.msra.mxu0 0.0
    %180 = vmatprep.subr.mxu0 0.0
    %181 = vmatpush1.msra.mxu0 0.0
    %182 = vmatprep.subr.mxu0 0.0
    %183 = vmatpush1.msra.mxu0 0.0
    %184 = vmatprep.mubr.f32.mxu0 0.0
    %185 = vmatmul.mubr.f32.gmra.mrb[0].mxu0 %v73
    %v186 = vpop.f32.mrb[0].mxu0
    %v187 = vadd.f32 0.0, %v186
    %v188 = vpop.f32.mrb[0].mxu0
    %v189 = vadd.f32 0.0, %v188
    %190 = vmatprep.mubr.f32.mxu0 0.0
    %191 = vmatmul.mubr.f32.gmra.mrb[0].mxu0 %v76
    %v192 = vpop.f32.mrb[0].mxu0
    %v193 = vadd.f32 0.0, %v192
    %v194 = vpop.f32.mrb[0].mxu0
    %v195 = vadd.f32 0.0, %v194
    %196 = vmatprep.mubr.f32.mxu0 0.0
    %197 = vmatmul.mubr.f32.gmra.mrb[0].mxu0 %v79
    %v198 = vpop.f32.mrb[0].mxu0
    %v199 = vadd.f32 0.0, %v198
    %v200 = vpop.f32.mrb[0].mxu0
    %v201 = vadd.f32 0.0, %v200
    %202 = vmatprep.mubr.f32.mxu0 0.0
    %203 = vmatmul.mubr.f32.gmra.mrb[0].mxu0 %v82
    %v204 = vpop.f32.mrb[0].mxu0
    %v205 = vadd.f32 0.0, %v204
    %v206 = vpop.f32.mrb[0].mxu0
    %v207 = vadd.f32 0.0, %v206
    %208 = vmatprep.mubr.f32.mxu0 0.0
    %209 = vmatmul.mubr.f32.gmra.mrb[0].mxu0 %v85
    %v210 = vpop.f32.mrb[0].mxu0
    %v211 = vadd.f32 0.0, %v210
    %v212 = vpop.f32.mrb[0].mxu0
    %v213 = vadd.f32 0.0, %v212
    %214 = vmatprep.mubr.f32.mxu0 0.0
    %215 = vmatmul.mubr.f32.gmra.mrb[0].mxu0 %v88
    %v216 = vpop.f32.mrb[0].mxu0
    %v217 = vadd.f32 0.0, %v216
    %v218 = vpop.f32.mrb[0].mxu0
    %v219 = vadd.f32 0.0, %v218
    %220 = vmatprep.mubr.f32.mxu0 0.0
    %221 = vmatmul.mubr.f32.gmra.mrb[0].mxu0 %v91
    %v222 = vpop.f32.mrb[0].mxu0
    %v223 = vadd.f32 0.0, %v222
    %v224 = vpop.f32.mrb[0].mxu0
    %v225 = vadd.f32 0.0, %v224
    %226 = vmatprep.mubr.f32.mxu0 0.0
    %227 = vmatmul.mubr.f32.gmra.mrb[0].mxu0 %v94
    %v228 = vpop.f32.mrb[0].mxu0
    %v229 = vadd.f32 0.0, %v228
    %v230 = vpop.f32.mrb[0].mxu0
    %v231 = vadd.f32 0.0, %v230
    %232 = vmatprep.mubr.f32.mxu0 0.0
    %233 = vmatmul.mubr.f32.gmra.mrb[0].mxu0 %v97
    %v234 = vpop.f32.mrb[0].mxu0
    %v235 = vadd.f32 0.0, %v234
    %v236 = vpop.f32.mrb[0].mxu0
    %v237 = vadd.f32 0.0, %v236
    %238 = vmatprep.mubr.f32.mxu0 0.0
    %239 = vmatmul.mubr.f32.gmra.mrb[0].mxu0 %v100
    %v240 = vpop.f32.mrb[0].mxu0
    %v241 = vadd.f32 0.0, %v240
    %v242 = vpop.f32.mrb[0].mxu0
    %v243 = vadd.f32 0.0, %v242
    %244 = vmatprep.mubr.f32.mxu0 0.0
    %245 = vmatmul.mubr.f32.gmra.mrb[0].mxu0 %v103
    %v246 = vpop.f32.mrb[0].mxu0
    %v247 = vadd.f32 0.0, %v246
    %v248 = vpop.f32.mrb[0].mxu0
    %v249 = vadd.f32 0.0, %v248
    %250 = vmatprep.mubr.f32.mxu0 0.0
    %251 = vmatmul.mubr.f32.gmra.mrb[0].mxu0 %v106
    %v252 = vpop.f32.mrb[0].mxu0
    %v253 = vadd.f32 0.0, %v252
    %v254 = vpop.f32.mrb[0].mxu0
    %v255 = vadd.f32 0.0, %v254
    %256 = vmatprep.mubr.f32.mxu0 0.0
    %257 = vmatmul.mubr.f32.gmra.mrb[0].mxu0 %v109
    %v258 = vpop.f32.mrb[0].mxu0
    %v259 = vadd.f32 0.0, %v258
    %v260 = vpop.f32.mrb[0].mxu0
    %v261 = vadd.f32 0.0, %v260
    %262 = vmatprep.mubr.f32.mxu0 0.0
    %263 = vmatmul.mubr.f32.gmra.mrb[0].mxu0 %v112
    %v264 = vpop.f32.mrb[0].mxu0
    %v265 = vadd.f32 0.0, %v264
    %v266 = vpop.f32.mrb[0].mxu0
    %v267 = vadd.f32 0.0, %v266
    %268 = vmatprep.mubr.f32.mxu0 0.0
    %269 = vmatmul.mubr.f32.gmra.mrb[0].mxu0 %v115
    %v270 = vpop.f32.mrb[0].mxu0
    %v271 = vadd.f32 0.0, %v270
    %v272 = vpop.f32.mrb[0].mxu0
    %v273 = vadd.f32 0.0, %v272
    %274 = vmatprep.mubr.f32.mxu0 0.0
    %275 = vmatmul.mubr.f32.gmra.mrb[0].mxu0 %v118
    %v276 = vpop.f32.mrb[0].mxu0
    %v277 = vadd.f32 0.0, %v276
    %v278 = vpop.f32.mrb[0].mxu0
    %v279 = vadd.f32 0.0, %v278
    %280 = vdwg.mxu0
    %281 = vmatprep.subr.mxu0 0.0
    %282 = vmatpush1.msra.mxu0 %v61
    %283 = vmatprep.subr.mxu0 0.0
    %284 = vmatpush1.msra.mxu0 %v64
    %285 = vmatprep.subr.mxu0 0.0
    %286 = vmatpush1.msra.mxu0 %v67
    %287 = vmatprep.subr.mxu0 0.0
    %288 = vmatpush1.msra.mxu0 %v70
    %289 = vmatprep.subr.mxu0 0.0
    %290 = vmatpush1.msra.mxu0 0.0
    %291 = vmatprep.subr.mxu0 0.0
    %292 = vmatpush1.msra.mxu0 0.0
    %293 = vmatprep.subr.mxu0 0.0
    %294 = vmatpush1.msra.mxu0 0.0
    %295 = vmatprep.subr.mxu0 0.0
    %296 = vmatpush1.msra.mxu0 0.0
    %297 = vmatprep.subr.mxu0 0.0
    %298 = vmatpush1.msra.mxu0 0.0
    %299 = vmatprep.subr.mxu0 0.0
    %300 = vmatpush1.msra.mxu0 0.0
    %301 = vmatprep.subr.mxu0 0.0
    %302 = vmatpush1.msra.mxu0 0.0
    %303 = vmatprep.subr.mxu0 0.0
    %304 = vmatpush1.msra.mxu0 0.0
    %305 = vmatprep.subr.mxu0 0.0
    %306 = vmatpush1.msra.mxu0 0.0
    %307 = vmatprep.subr.mxu0 0.0
    %308 = vmatpush1.msra.mxu0 0.0
    %309 = vmatprep.subr.mxu0 0.0
    %310 = vmatpush1.msra.mxu0 0.0
    %311 = vmatprep.subr.mxu0 0.0
    %312 = vmatpush1.msra.mxu0 0.0
    %313 = vmatprep.subr.mxu0 0.0
    %314 = vmatpush1.msra.mxu0 0.0
    %315 = vmatprep.subr.mxu0 0.0
    %316 = vmatpush1.msra.mxu0 0.0
    %317 = vmatprep.subr.mxu0 0.0
    %318 = vmatpush1.msra.mxu0 0.0
    %319 = vmatprep.subr.mxu0 0.0
    %320 = vmatpush1.msra.mxu0 0.0
    %321 = vmatprep.subr.mxu0 0.0
    %322 = vmatpush1.msra.mxu0 0.0
    %323 = vmatprep.subr.mxu0 0.0
    %324 = vmatpush1.msra.mxu0 0.0
    %325 = vmatprep.subr.mxu0 0.0
    %326 = vmatpush1.msra.mxu0 0.0
    %327 = vmatprep.subr.mxu0 0.0
    %328 = vmatpush1.msra.mxu0 0.0
    %329 = vmatprep.subr.mxu0 0.0
    %330 = vmatpush1.msra.mxu0 0.0
    %331 = vmatprep.subr.mxu0 0.0
    %332 = vmatpush1.msra.mxu0 0.0
    %333 = vmatprep.subr.mxu0 0.0
    %334 = vmatpush1.msra.mxu0 0.0
    %335 = vmatprep.subr.mxu0 0.0
    %336 = vmatpush1.msra.mxu0 0.0
    %337 = vmatprep.subr.mxu0 0.0
    %338 = vmatpush1.msra.mxu0 0.0
    %339 = vmatprep.subr.mxu0 0.0
    %340 = vmatpush1.msra.mxu0 0.0
    %341 = vmatprep.subr.mxu0 0.0
    %342 = vmatpush1.msra.mxu0 0.0
    %343 = vmatprep.subr.mxu0 0.0
    %344 = vmatpush1.msra.mxu0 0.0
    %345 = vmatprep.mubr.f32.mxu0 0.0
    %346 = vmatmul.mubr.f32.gmra.mrb[0].mxu0 %v73
    %v347 = vpop.f32.mrb[0].mxu0
    %v348 = vadd.f32 0.0, %v347
    %v349 = vpop.f32.mrb[0].mxu0
    %350 = vmatprep.mubr.f32.mxu0 0.0
    %351 = vmatmul.mubr.f32.gmra.mrb[0].mxu0 %v76
    %v352 = vpop.f32.mrb[0].mxu0
    %v353 = vadd.f32 0.0, %v352
    %v354 = vpop.f32.mrb[0].mxu0
    %355 = vmatprep.mubr.f32.mxu0 0.0
    %356 = vmatmul.mubr.f32.gmra.mrb[0].mxu0 %v79
    %v357 = vpop.f32.mrb[0].mxu0
    %v358 = vadd.f32 0.0, %v357
    %v359 = vpop.f32.mrb[0].mxu0
    %360 = vmatprep.mubr.f32.mxu0 0.0
    %361 = vmatmul.mubr.f32.gmra.mrb[0].mxu0 %v82
    %v362 = vpop.f32.mrb[0].mxu0
    %v363 = vadd.f32 0.0, %v362
    %v364 = vpop.f32.mrb[0].mxu0
    %365 = vmatprep.mubr.f32.mxu0 0.0
    %366 = vmatmul.mubr.f32.gmra.mrb[0].mxu0 %v85
    %v367 = vpop.f32.mrb[0].mxu0
    %v368 = vadd.f32 0.0, %v367
    %v369 = vpop.f32.mrb[0].mxu0
    %370 = vmatprep.mubr.f32.mxu0 0.0
    %371 = vmatmul.mubr.f32.gmra.mrb[0].mxu0 %v88
    %v372 = vpop.f32.mrb[0].mxu0
    %v373 = vadd.f32 0.0, %v372
    %v374 = vpop.f32.mrb[0].mxu0
    %375 = vmatprep.mubr.f32.mxu0 0.0
    %376 = vmatmul.mubr.f32.gmra.mrb[0].mxu0 %v91
    %v377 = vpop.f32.mrb[0].mxu0
    %v378 = vadd.f32 0.0, %v377
    %v379 = vpop.f32.mrb[0].mxu0
    %380 = vmatprep.mubr.f32.mxu0 0.0
    %381 = vmatmul.mubr.f32.gmra.mrb[0].mxu0 %v94
    %v382 = vpop.f32.mrb[0].mxu0
    %v383 = vadd.f32 0.0, %v382
    %v384 = vpop.f32.mrb[0].mxu0
    %385 = vmatprep.mubr.f32.mxu0 0.0
    %386 = vmatmul.mubr.f32.gmra.mrb[0].mxu0 %v97
    %v387 = vpop.f32.mrb[0].mxu0
    %v388 = vadd.f32 0.0, %v387
    %v389 = vpop.f32.mrb[0].mxu0
    %390 = vmatprep.mubr.f32.mxu0 0.0
    %391 = vmatmul.mubr.f32.gmra.mrb[0].mxu0 %v100
    %v392 = vpop.f32.mrb[0].mxu0
    %v393 = vadd.f32 0.0, %v392
    %v394 = vpop.f32.mrb[0].mxu0
    %395 = vmatprep.mubr.f32.mxu0 0.0
    %396 = vmatmul.mubr.f32.gmra.mrb[0].mxu0 %v103
    %v397 = vpop.f32.mrb[0].mxu0
    %v398 = vadd.f32 0.0, %v397
    %v399 = vpop.f32.mrb[0].mxu0
    %400 = vmatprep.mubr.f32.mxu0 0.0
    %401 = vmatmul.mubr.f32.gmra.mrb[0].mxu0 %v106
    %v402 = vpop.f32.mrb[0].mxu0
    %v403 = vadd.f32 0.0, %v402
    %v404 = vpop.f32.mrb[0].mxu0
    %405 = vmatprep.mubr.f32.mxu0 0.0
    %406 = vmatmul.mubr.f32.gmra.mrb[0].mxu0 %v109
    %v407 = vpop.f32.mrb[0].mxu0
    %v408 = vadd.f32 0.0, %v407
    %v409 = vpop.f32.mrb[0].mxu0
    %410 = vmatprep.mubr.f32.mxu0 0.0
    %411 = vmatmul.mubr.f32.gmra.mrb[0].mxu0 %v112
    %v412 = vpop.f32.mrb[0].mxu0
    %v413 = vadd.f32 0.0, %v412
    %v414 = vpop.f32.mrb[0].mxu0
    %415 = vmatprep.mubr.f32.mxu0 0.0
    %416 = vmatmul.mubr.f32.gmra.mrb[0].mxu0 %v115
    %v417 = vpop.f32.mrb[0].mxu0
    %v418 = vadd.f32 0.0, %v417
    %v419 = vpop.f32.mrb[0].mxu0
    %420 = vmatprep.mubr.f32.mxu0 0.0
    %421 = vmatmul.mubr.f32.gmra.mrb[0].mxu0 %v118
    %v422 = vpop.f32.mrb[0].mxu0
    %v423 = vadd.f32 0.0, %v422
    %v424 = vpop.f32.mrb[0].mxu0
    %425 = vdwg.mxu0
    %vm442 = vcmask 1046528
    %v443 = vrot.slane %v189, 1
    %v444 = vrot.slane %v195, 1
    %v445 = vsel %vm442, %v443, %v444
    %v446 = vrot.slane %v201, 1
    %v447 = vrot.slane %v207, 1
    %v448 = vsel %vm442, %v446, %v447
    %v449 = vrot.slane %v213, 1
    %v450 = vrot.slane %v219, 1
    %v451 = vsel %vm442, %v449, %v450
    %v452 = vrot.slane %v225, 1
    %v453 = vrot.slane %v231, 1
    %v454 = vsel %vm442, %v452, %v453
    %v455 = vrot.slane %v237, 1
    %v456 = vrot.slane %v243, 1
    %v457 = vsel %vm442, %v455, %v456
    %v458 = vrot.slane %v249, 1
    %v459 = vrot.slane %v255, 1
    %v460 = vsel %vm442, %v458, %v459
    %v461 = vrot.slane %v261, 1
    %v462 = vrot.slane %v267, 1
    %v463 = vsel %vm442, %v461, %v462
    %v464 = vrot.slane %v273, 1
    %v465 = vrot.slane %v279, 1
    %v466 = vsel %vm442, %v464, %v465
    %v483 = vadd.f32 %v187, %v445
    %v484 = vadd.f32 %v193, %v444
    %v485 = vadd.f32 %v199, %v448
    %v486 = vadd.f32 %v205, %v447
    %v487 = vadd.f32 %v211, %v451
    %v488 = vadd.f32 %v217, %v450
    %v489 = vadd.f32 %v223, %v454
    %v490 = vadd.f32 %v229, %v453
    %v491 = vadd.f32 %v235, %v457
    %v492 = vadd.f32 %v241, %v456
    %v493 = vadd.f32 %v247, %v460
    %v494 = vadd.f32 %v253, %v459
    %v495 = vadd.f32 %v259, %v463
    %v496 = vadd.f32 %v265, %v462
    %v497 = vadd.f32 %v271, %v466
    %v498 = vadd.f32 %v277, %v465
    %vm515 = vcmask 1045504
    %v516 = vrot.slane %v348, 2
    %v517 = vrot.slane %v353, 2
    %v518 = vsel %vm515, %v516, %v517
    %v519 = vrot.slane %v358, 2
    %v520 = vrot.slane %v363, 2
    %v521 = vsel %vm515, %v519, %v520
    %v522 = vrot.slane %v368, 2
    %v523 = vrot.slane %v373, 2
    %v524 = vsel %vm515, %v522, %v523
    %v525 = vrot.slane %v378, 2
    %v526 = vrot.slane %v383, 2
    %v527 = vsel %vm515, %v525, %v526
    %v528 = vrot.slane %v388, 2
    %v529 = vrot.slane %v393, 2
    %v530 = vsel %vm515, %v528, %v529
    %v531 = vrot.slane %v398, 2
    %v532 = vrot.slane %v403, 2
    %v533 = vsel %vm515, %v531, %v532
    %v534 = vrot.slane %v408, 2
    %v535 = vrot.slane %v413, 2
    %v536 = vsel %vm515, %v534, %v535
    %v537 = vrot.slane %v418, 2
    %v538 = vrot.slane %v423, 2
    %v539 = vsel %vm515, %v537, %v538
    %v556 = vadd.f32 %v483, %v518
    %v557 = vadd.f32 %v484, %v517
    %v558 = vadd.f32 %v485, %v521
    %v559 = vadd.f32 %v486, %v520
    %v560 = vadd.f32 %v487, %v524
    %v561 = vadd.f32 %v488, %v523
    %v562 = vadd.f32 %v489, %v527
    %v563 = vadd.f32 %v490, %v526
    %v564 = vadd.f32 %v491, %v530
    %v565 = vadd.f32 %v492, %v529
    %v566 = vadd.f32 %v493, %v533
    %v567 = vadd.f32 %v494, %v532
    %v568 = vadd.f32 %v495, %v536
    %v569 = vadd.f32 %v496, %v535
    %v570 = vadd.f32 %v497, %v539
    %v571 = vadd.f32 %v498, %v538
    %v572 = vsel %vm515, %v557, -inf
    %v573 = vmax.f32 %v556, %v572
    %v574 = vrot.slane %v573, 4
    %v575 = vmax.f32 %v573, %v574
    %v576 = vrot.slane %v575, 2
    %v577 = vmax.f32 %v575, %v576
    %v578 = vrot.slane %v577, 1
    %v579 = vmax.f32 %v577, %v578
    %v580 = vsel %vm515, %v559, -inf
    %v581 = vmax.f32 %v558, %v580
    %v582 = vrot.slane %v581, 4
    %v583 = vmax.f32 %v581, %v582
    %v584 = vrot.slane %v583, 2
    %v585 = vmax.f32 %v583, %v584
    %v586 = vrot.slane %v585, 1
    %v587 = vmax.f32 %v585, %v586
    %v588 = vsel %vm515, %v561, -inf
    %v589 = vmax.f32 %v560, %v588
    %v590 = vrot.slane %v589, 4
    %v591 = vmax.f32 %v589, %v590
    %v592 = vrot.slane %v591, 2
    %v593 = vmax.f32 %v591, %v592
    %v594 = vrot.slane %v593, 1
    %v595 = vmax.f32 %v593, %v594
    %v596 = vsel %vm515, %v563, -inf
    %v597 = vmax.f32 %v562, %v596
    %v598 = vrot.slane %v597, 4
    %v599 = vmax.f32 %v597, %v598
    %v600 = vrot.slane %v599, 2
    %v601 = vmax.f32 %v599, %v600
    %v602 = vrot.slane %v601, 1
    %v603 = vmax.f32 %v601, %v602
    %v604 = vsel %vm515, %v565, -inf
    %v605 = vmax.f32 %v564, %v604
    %v606 = vrot.slane %v605, 4
    %v607 = vmax.f32 %v605, %v606
    %v608 = vrot.slane %v607, 2
    %v609 = vmax.f32 %v607, %v608
    %v610 = vrot.slane %v609, 1
    %v611 = vmax.f32 %v609, %v610
    %v612 = vsel %vm515, %v567, -inf
    %v613 = vmax.f32 %v566, %v612
    %v614 = vrot.slane %v613, 4
    %v615 = vmax.f32 %v613, %v614
    %v616 = vrot.slane %v615, 2
    %v617 = vmax.f32 %v615, %v616
    %v618 = vrot.slane %v617, 1
    %v619 = vmax.f32 %v617, %v618
    %v620 = vsel %vm515, %v569, -inf
    %v621 = vmax.f32 %v568, %v620
    %v622 = vrot.slane %v621, 4
    %v623 = vmax.f32 %v621, %v622
    %v624 = vrot.slane %v623, 2
    %v625 = vmax.f32 %v623, %v624
    %v626 = vrot.slane %v625, 1
    %v627 = vmax.f32 %v625, %v626
    %v628 = vsel %vm515, %v571, -inf
    %v629 = vmax.f32 %v570, %v628
    %v630 = vrot.slane %v629, 4
    %v631 = vmax.f32 %v629, %v630
    %v632 = vrot.slane %v631, 2
    %v633 = vmax.f32 %v631, %v632
    %v634 = vrot.slane %v633, 1
    %v635 = vmax.f32 %v633, %v634
    %v636 = vld [vmem:[%s2] sm:$0x1]
    %v638 = vlaneseq
    %v639 = vshrl.u32 %v638, 7
    %v640 = vsub.s32 0, %v639
    %v641 = vrot.slane %v636, %v640
    %v643 = vadd.f32 %v579, %v641
    %v644 = vadd.f32 %v587, %v641
    %v645 = vadd.f32 %v595, %v641
    %v646 = vadd.f32 %v603, %v641
    %v647 = vadd.f32 %v611, %v641
    %v648 = vadd.f32 %v619, %v641
    %v649 = vadd.f32 %v627, %v641
    %v650 = vadd.f32 %v635, %v641
    %v651 = vmax.f32 %v643, 0.0
    %v652 = vmax.f32 %v644, 0.0
    %v653 = vmax.f32 %v645, 0.0
    %v654 = vmax.f32 %v646, 0.0
    %v655 = vmax.f32 %v647, 0.0
    %v656 = vmax.f32 %v648, 0.0
    %v657 = vmax.f32 %v649, 0.0
    %v658 = vmax.f32 %v650, 0.0
    %v667 = vrot.slane %v652, 7
    %vm668 = vcmask 1041409
    %v669 = vsel %vm668, %v667, %v651
    %v670 = vrot.slane %v653, 6
    %vm671 = vcmask 1042434
    %v672 = vsel %vm671, %v670, %v669
    %v673 = vrot.slane %v654, 5
    %vm674 = vcmask 1043459
    %v675 = vsel %vm674, %v673, %v672
    %v676 = vrot.slane %v655, 4
    %vm677 = vcmask 1044484
    %v678 = vsel %vm677, %v676, %v675
    %v679 = vrot.slane %v656, 3
    %vm680 = vcmask 1045509
    %v681 = vsel %vm680, %v679, %v678
    %v682 = vrot.slane %v657, 2
    %vm683 = vcmask 1046534
    %v684 = vsel %vm683, %v682, %v681
    %v685 = vrot.slane %v658, 1
    %vm686 = vcmask 1047559
    %v687 = vsel %vm686, %v685, %v684
    %689 = vst [vmem:[#allocation7] sm:$0xff] %v687
    // Predicated region
    $region22: #{tpu_custom_call.1} parent=1 // pred_check
      _
    $region23: #{tpu_custom_call.1} parent=1 // pred_check_branch
      %691 = sbr.rel (0) target = $region25
    $region24: #{tpu_custom_call.1} parent=1 // pred_region
      %s693 = ssub.s32 128, 128
      %694 = vsyncadd [#allocation4], %s693
      %s696 = sshll.u32 [#allocation7], 4
      %s697 = int_to_ptr.vmem [resolvable:$true] %s696
      %699 = dma.vmem_to_hbm [thread:$0]  %s697, 128, %s3, [#allocation4]
    $region25: #{tpu_custom_call.1} parent=1 // pred_fallthru
      _
    // Predicated region
    $region26: #{tpu_custom_call.1} parent=1 // pred_check
      _
    $region27: #{tpu_custom_call.1} parent=1 // pred_check_branch
      %701 = sbr.rel (0) target = $region29
    $region28: #{tpu_custom_call.1} parent=1 // pred_region
      %702 = dma.done [#allocation4], 128
    $region29: #{tpu_custom_call.1} parent=1 // pred_fallthru
      _
    %703 = vsyncpa [#allocation3], 1
    %704 = vsyncpa [#allocation6], 1
    %705 = vsyncpa [#allocation4], 1

</llo_original>
